<compile_context>
chip_gen: v6e
topology: v6e:2x2x1
jax: 0.10.0
libtpu: 0.0.40
codegen_flags: <defaults>
</compile_context>

<pallas_src>
import functools
import math

import jax
import jax.numpy as jnp
from jax.experimental import pallas as pl
from jax.experimental.pallas import tpu as pltpu


# --------------------------------------------------------------------------
# Helpers
# --------------------------------------------------------------------------

def _round_up(x, m):
    return (x + m - 1) // m * m


def _cdiv(a, b):
    return (a + b - 1) // b


def _shrink(t, align):
    """Roughly halve t, staying a positive multiple of `align`."""
    t2 = (t // 2) // align * align
    return max(align, t2)


def _vmem_physical_bytes():
    """Per-TensorCore physical VMEM, from device_kind (conservative default)."""
    try:
        kind = (jax.devices()[0].device_kind or "").lower()
    except Exception:
        kind = ""
    if "v2" in kind or "v3" in kind:
        return 16 * 1024 * 1024
    if "v4" in kind or "v5" in kind or "v6" in kind or "trillium" in kind:
        return 128 * 1024 * 1024
    # v7x (64 MiB) and anything unknown: stay conservative.
    return 64 * 1024 * 1024


# --------------------------------------------------------------------------
# Projection kernel: y = (x @ W + b) * scale, emitted in the compute dtype.
# --------------------------------------------------------------------------

def _proj_kernel(x_ref, w_ref, b_ref, o_ref, *, scale, compute_dtype):
    x = x_ref[0].astype(compute_dtype)                       # (ts, Din)
    y = jnp.dot(x, w_ref[...], preferred_element_type=jnp.float32)
    y = y + b_ref[...]                                       # f32 bias add
    if scale != 1.0:
        y = y * scale                                        # fold softmax scale
    o_ref[0] = y.astype(o_ref.dtype)


def _project(x, w, b, dp, ts, scale, compute_dtype, vmem_limit):
    """x: (B, S, Din) with S % ts == 0; w: (Din, d); b: (d,).  Output (B, S, dp)."""
    B, S, Din = x.shape
    d = w.shape[1]
    if dp != d:  # zero-pad head dim to a lane-dense multiple of 128 (exact)
        w = jnp.pad(w, ((0, 0), (0, dp - d)))
        b = jnp.pad(b, (0, dp - d))
    w = w.astype(compute_dtype)
    b = b.reshape(1, dp).astype(jnp.float32)

    kernel = functools.partial(_proj_kernel, scale=scale,
                               compute_dtype=compute_dtype)
    return pl.pallas_call(
        kernel,
        out_shape=jax.ShapeDtypeStruct((B, S, dp), compute_dtype),
        grid_spec=pltpu.PrefetchScalarGridSpec(
            num_scalar_prefetch=0,
            grid=(B, S // ts),
            in_specs=[
                pl.BlockSpec((1, ts, Din), lambda bb, si: (bb, si, 0)),
                pl.BlockSpec((Din, dp), lambda bb, si: (0, 0)),   # constant weights
                pl.BlockSpec((1, dp), lambda bb, si: (0, 0)),     # constant bias
            ],
            out_specs=pl.BlockSpec((1, ts, dp), lambda bb, si: (bb, si, 0)),
        ),
        compiler_params=pltpu.CompilerParams(
            dimension_semantics=("parallel", "parallel"),
            vmem_limit_bytes=vmem_limit,
        ),
    )(x, w, b)


# --------------------------------------------------------------------------
# Flash-attention kernel over pre-projected (and pre-scaled) Q, K, V.
# --------------------------------------------------------------------------

def _flash_attn_kernel(q_ref, k_ref, v_ref, o_ref, m_sc, l_sc, acc_sc,
                       *, tk, sk_valid, mask_kv):
    ki = pl.program_id(2)

    @pl.when(ki == 0)
    def _init():
        m_sc[...] = jnp.full(m_sc.shape, -jnp.inf, jnp.float32)
        l_sc[...] = jnp.zeros_like(l_sc)
        acc_sc[...] = jnp.zeros_like(acc_sc)

    q = q_ref[0]                                   # (tq, dqk_p)  compute dtype
    k = k_ref[0]                                   # (tk, dqk_p)  compute dtype
    # scores = q @ k^T: contract the last dims of both -> no transpose pass.
    s = jax.lax.dot_general(q, k, (((1,), (1,)), ((), ())),
                            preferred_element_type=jnp.float32)   # (tq, tk) f32

    if mask_kv:
        # Mask zero-padded key positions (projected padding rows equal the
        # bias, so they must not contribute to the softmax).
        pos = ki * tk + jax.lax.broadcasted_iota(jnp.int32, s.shape, 1)
        s = jnp.where(pos < sk_valid, s, -1e30)

    # Online softmax with unnormalized accumulation (all state in f32).
    m_prev = m_sc[...]
    m_new = jnp.maximum(m_prev, jnp.max(s, axis=-1, keepdims=True))
    alpha = jnp.exp(m_prev - m_new)
    p = jnp.exp(s - m_new)
    l_sc[...] = alpha * l_sc[...] + jnp.sum(p, axis=-1, keepdims=True)
    acc_sc[...] = alpha * acc_sc[...] + jnp.dot(
        p.astype(v_ref.dtype), v_ref[0], preferred_element_type=jnp.float32)
    m_sc[...] = m_new

    @pl.when(ki == pl.num_programs(2) - 1)
    def _finalize():
        inv_l = pl.reciprocal(l_sc[...], approx=False)   # exact; off the hot loop
        o_ref[0] = (acc_sc[...] * inv_l).astype(o_ref.dtype)


# --------------------------------------------------------------------------
# Wrapper
# --------------------------------------------------------------------------

def attention_head(query, key, value, wq, bq, wk, bk, wv, bv):
    """Pallas equivalent of AttentionHead.forward.

    query: (B, Sq, Din); key/value: (B, Sk, Din).
    Weights are pre-transposed to (Din, Dout) so y = x @ W + b (PyTorch Linear).
    """
    B, Sq, Din = query.shape
    _, Sk, _ = key.shape
    assert key.shape == (B, Sk, Din) and value.shape == (B, Sk, Din)
    dim_q, dim_k, dim_v = wq.shape[1], wk.shape[1], wv.shape[1]
    assert dim_q == dim_k, "q @ k^T requires dim_q == dim_k"

    out_dtype = query.dtype
    # bf16 matmuls with f32 accumulation (standard flash-attention numerics).
    compute_dtype = jnp.bfloat16 if query.dtype == jnp.float32 else query.dtype
    cbytes = jnp.dtype(compute_dtype).itemsize
    inbytes = jnp.dtype(query.dtype).itemsize
    obytes = jnp.dtype(out_dtype).itemsize

    # Head dims zero-padded to multiples of 128: lane-dense stores and
    # >=128-wide MXU contraction.  Exact (padded columns are zero).
    dqk_p = max(_round_up(dim_q, 128), 128)
    dv_p = max(_round_up(dim_v, 128), 128)

    # dtype-aware sublane alignment for sequence tiles (8 f32 / 16 bf16 / 32 i8).
    seq_align = 8 * max(1, 4 // cbytes)

    # ---- VMEM-budget-aware tile selection -------------------------------
    phys = _vmem_physical_bytes()
    vmem_limit = (3 * phys) // 4
    budget = max(vmem_limit - 6 * 1024 * 1024, vmem_limit // 2)

    def flash_bytes(tq, tk):
        inputs = 2 * (tq * dqk_p + tk * dqk_p + tk * dv_p) * cbytes  # dbl-buffered
        outs = 2 * tq * dv_p * obytes
        scratch = tq * dv_p * 4 + 2 * tq * 128 * 4   # acc + m/l ((tq,1) -> 128 lanes)
        return inputs + outs + scratch

    def proj_bytes(ts, dp):
        return (2 * ts * Din * inbytes + 2 * ts * dp * cbytes
                + 2 * Din * dp * cbytes + 2 * 8 * dp * 4)

    def total_bytes(tq, tk):
        return max(flash_bytes(tq, tk),
                   proj_bytes(tq, dqk_p),
                   proj_bytes(tk, dqk_p),
                   proj_bytes(tk, dv_p))

    tq = _round_up(min(_round_up(Sq, seq_align), 1024), seq_align)
    tk = _round_up(min(_round_up(Sk, seq_align), 1024), seq_align)
    while total_bytes(tq, tk) > budget:
        if tk >= tq and tk > seq_align:
            tk = _shrink(tk, seq_align)
        elif tq > seq_align:
            tq = _shrink(tq, seq_align)
        else:
            break

    # v7x megacore: keep at least 2 "parallel" grid points if possible.
    while B * _cdiv(Sq, tq) < 2:
        new_tq = _shrink(tq, seq_align)
        if new_tq == tq:
            break
        tq = new_tq

    # ---- sequence padding (no whole-axis fallback) ----------------------
    Sq_p = _round_up(Sq, tq)
    Sk_p = _round_up(Sk, tk)

    def pad_seq(x, s_p):
        s = x.shape[1]
        return x if s_p == s else jnp.pad(x, ((0, 0), (0, s_p - s), (0, 0)))

    query_p = pad_seq(query, Sq_p)
    key_p = pad_seq(key, Sk_p)
    value_p = pad_seq(value, Sk_p)

    # ---- projections (once per token; scale folded into Q) --------------
    scale = 1.0 / math.sqrt(dim_q)   # torch: q.size(-1) ** 0.5, unpadded dim_q
    q_proj = _project(query_p, wq, bq, dqk_p, tq, scale, compute_dtype, vmem_limit)
    k_proj = _project(key_p, wk, bk, dqk_p, tk, 1.0, compute_dtype, vmem_limit)
    v_proj = _project(value_p, wv, bv, dv_p, tk, 1.0, compute_dtype, vmem_limit)

    # ---- flash attention over projected tiles ----------------------------
    grid = (B, Sq_p // tq, Sk_p // tk)
    kernel = functools.partial(_flash_attn_kernel, tk=tk, sk_valid=Sk,
                               mask_kv=(Sk_p != Sk))

    out_p = pl.pallas_call(
        kernel,
        out_shape=jax.ShapeDtypeStruct((B, Sq_p, dv_p), out_dtype),
        grid_spec=pltpu.PrefetchScalarGridSpec(
            num_scalar_prefetch=0,
            grid=grid,
            in_specs=[
                pl.BlockSpec((1, tq, dqk_p), lambda b, qi, ki: (b, qi, 0)),
                pl.BlockSpec((1, tk, dqk_p), lambda b, qi, ki: (b, ki, 0)),
                pl.BlockSpec((1, tk, dv_p), lambda b, qi, ki: (b, ki, 0)),
            ],
            out_specs=pl.BlockSpec((1, tq, dv_p), lambda b, qi, ki: (b, qi, 0)),
            scratch_shapes=[
                pltpu.VMEM((tq, 1), jnp.float32),      # running max m
                pltpu.VMEM((tq, 1), jnp.float32),      # running denom l
                pltpu.VMEM((tq, dv_p), jnp.float32),   # unnormalized output acc
            ],
        ),
        compiler_params=pltpu.CompilerParams(
            dimension_semantics=("parallel", "parallel", "arbitrary"),
            vmem_limit_bytes=vmem_limit,
        ),
    )(q_proj, k_proj, v_proj)

    # Slice away padded query rows / padded head-dim columns only if needed.
    if Sq_p != Sq or dv_p != dim_v:
        out_p = out_p[:, :Sq, :dim_v]
    return out_p


# --------------------------------------------------------------------------
# Pure-JAX reference (f32 end to end)
# --------------------------------------------------------------------------

def attention_head_ref(query, key, value, wq, bq, wk, bk, wv, bv):
    q = query @ wq + bq
    k = key @ wk + bk
    v = value @ wv + bv
    scale = q.shape[-1] ** 0.5
    s = jnp.einsum("bqd,bkd->bqk", q, k) / scale
    p = jax.nn.softmax(s, axis=-1)
    return jnp.einsum("bqk,bkd->bqd", p, v)


if __name__ == "__main__":
    # Small shapes consistent with the module's forward.
    B, S, DIM_IN = 2, 8, 32
    DIM_Q = DIM_K = 16   # dim_q must equal dim_k for q @ k^T
    DIM_V = 16

    key0 = jax.random.PRNGKey(0)
    ks = jax.random.split(key0, 9)

    query = jax.random.normal(ks[0], (B, S, DIM_IN), dtype=jnp.float32)
    key_in = jax.random.normal(ks[1], (B, S, DIM_IN), dtype=jnp.float32)
    value = jax.random.normal(ks[2], (B, S, DIM_IN), dtype=jnp.float32)

    # PyTorch Linear: W is (out, in); we store the transpose (in, out) so the
    # kernel computes x @ W + b.
    def init_linear(kw, kb, din, dout):
        bound = 1.0 / (din ** 0.5)
        w = jax.random.uniform(kw, (din, dout), jnp.float32, -bound, bound)
        b = jax.random.uniform(kb, (dout,), jnp.float32, -bound, bound)
        return w, b

    wq, bq = init_linear(ks[3], ks[4], DIM_IN, DIM_Q)
    wk, bk = init_linear(ks[5], ks[6], DIM_IN, DIM_K)
    wv, bv = init_linear(ks[7], ks[8], DIM_IN, DIM_V)

    out = attention_head(query, key_in, value, wq, bq, wk, bk, wv, bv)
    out = jax.block_until_ready(out)

    ref = attention_head_ref(query, key_in, value, wq, bq, wk, bk, wv, bv)
    assert out.shape == (B, S, DIM_V)
    # The kernel runs the projections and attention matmuls in bf16 (f32
    # accumulation) per the performance review; the reference is full f32,
    # so tolerances reflect the standard flash-attention bf16 tradeoff
    # (observed error is ~1e-2 at these magnitudes).
    assert jnp.allclose(out, ref, atol=5e-2, rtol=5e-2), "mismatch vs reference"

    print("KERNEL_OK")
</pallas_src>

<mosaic_0001>
module attributes {stable_mosaic.version = 11 : i64} {
  func.func @_proj_kernel(%arg0: i32, %arg1: i32, %arg2: memref<1x16x32xf32, #tpu.memory_space<vmem>>, %arg3: memref<32x128xbf16, #tpu.memory_space<vmem>>, %arg4: memref<1x128xf32, #tpu.memory_space<vmem>>, %arg5: memref<1x16x128xbf16, #tpu.memory_space<vmem>>) attributes {dimension_semantics = [#tpu.dimension_semantics<parallel>, #tpu.dimension_semantics<parallel>], iteration_bounds = array<i64: 2, 1>, scalar_prefetch = 0 : i64, scratch_operands = 0 : i64, tpu.core_type = #tpu.core_type<tc>, window_params = [{transform_indices = @transform_0, window_bounds = array<i64: 1, 16, 32>}, {pipeline_mode = #tpu.pipeline_mode<synchronous>, transform_indices = @transform_1, window_bounds = array<i64: 32, 128>}, {pipeline_mode = #tpu.pipeline_mode<synchronous>, transform_indices = @transform_2, window_bounds = array<i64: 1, 128>}, {transform_indices = @transform_3, window_bounds = array<i64: 1, 16, 128>}]} {
    %c0 = arith.constant 0 : index
    %c0_0 = arith.constant 0 : index
    %c0_1 = arith.constant 0 : index
    %0 = vector.load %arg2[%c0, %c0_0, %c0_1] : memref<1x16x32xf32, #tpu.memory_space<vmem>>, vector<1x16x32xf32>
    %1 = vector.shape_cast %0 : vector<1x16x32xf32> to vector<16x32xf32>
    %2 = arith.truncf %1 : vector<16x32xf32> to vector<16x32xbf16>
    %c0_2 = arith.constant 0 : index
    %c0_3 = arith.constant 0 : index
    %3 = vector.load %arg3[%c0_2, %c0_3] : memref<32x128xbf16, #tpu.memory_space<vmem>>, vector<32x128xbf16>
    %cst = arith.constant dense<0.000000e+00> : vector<16x128xf32>
    %4 = tpu.matmul %2, %3, %cst {dimension_numbers = #tpu.dot_dimension_numbers<[1], [0], [0], [1], [0, 0, 1, 1], [], []>} : vector<16x32xbf16>, vector<32x128xbf16>, vector<16x128xf32> -> vector<16x128xf32>
    %c0_4 = arith.constant 0 : index
    %c0_5 = arith.constant 0 : index
    %5 = vector.load %arg4[%c0_4, %c0_5] : memref<1x128xf32, #tpu.memory_space<vmem>>, vector<1x128xf32>
    %6 = vector.broadcast %5 : vector<1x128xf32> to vector<16x128xf32>
    %7 = arith.addf %4, %6 : vector<16x128xf32>
    %cst_6 = arith.constant 2.500000e-01 : f32
    %8 = vector.broadcast %cst_6 : f32 to vector<16x128xf32>
    %9 = arith.mulf %7, %8 : vector<16x128xf32>
    %10 = arith.truncf %9 : vector<16x128xf32> to vector<16x128xbf16>
    %c0_7 = arith.constant 0 : index
    %c0_8 = arith.constant 0 : index
    %c0_9 = arith.constant 0 : index
    %11 = vector.load %arg5[%c0_7, %c0_8, %c0_9] : memref<1x16x128xbf16, #tpu.memory_space<vmem>>, vector<1x16x128xbf16>
    %12 = vector.shape_cast %11 : vector<1x16x128xbf16> to vector<16x128xbf16>
    %13 = vector.shape_cast %10 : vector<16x128xbf16> to vector<1x16x128xbf16>
    tpu.vector_store %arg5[%c0_7, %c0_8, %c0_9], %13 {strides = array<i32>} : memref<1x16x128xbf16, #tpu.memory_space<vmem>>, vector<1x16x128xbf16>,
    return
  }
  func.func @transform_0(%arg0: i32, %arg1: i32) -> (i32, i32, i32) {
    %c0_i32 = arith.constant 0 : i32
    %c0_i32_0 = arith.constant 0 : i32
    return %arg0, %arg1, %c0_i32 : i32, i32, i32
  }
  func.func @transform_1(%arg0: i32, %arg1: i32) -> (i32, i32) {
    %c0_i32 = arith.constant 0 : i32
    %c0_i32_0 = arith.constant 0 : i32
    %c0_i32_1 = arith.constant 0 : i32
    return %c0_i32, %c0_i32_0 : i32, i32
  }
  func.func @transform_2(%arg0: i32, %arg1: i32) -> (i32, i32) {
    %c0_i32 = arith.constant 0 : i32
    %c0_i32_0 = arith.constant 0 : i32
    %c0_i32_1 = arith.constant 0 : i32
    return %c0_i32, %c0_i32_0 : i32, i32
  }
  func.func @transform_3(%arg0: i32, %arg1: i32) -> (i32, i32, i32) {
    %c0_i32 = arith.constant 0 : i32
    %c0_i32_0 = arith.constant 0 : i32
    return %arg0, %arg1, %c0_i32 : i32, i32, i32
  }
}

</mosaic_0001>

<llo_original>
// kernel: tpu_custom_call.1
$region0: #{tpu_custom_call.1}
  #allocation0 [shape = 'u32[]', space=smem, size = 0x4, offset = 0x4, fixed_abs, tag = 'smem constant byte address 0x4 - core index']
  #allocation1 [shape = 'u32[144,128]{1,0:T(1,128)}', space=vmem, size = 0x12000, scoped, tag = 'internal scratch']
  %s0 = inlined_call_operand.hbm [shape: f32[2,16,32], index: 0, kind: input, shape index: {}]
  %s1 = inlined_call_operand.hbm [shape: bf16[32,128], index: 1, kind: input, shape index: {}]
  %s2 = inlined_call_operand.vmem [shape: f32[1,128], index: 2, kind: input, shape index: {}]
  %s3 = inlined_call_operand.hbm [shape: bf16[2,16,128], index: 3, kind: output, shape index: {}]
  %s4 = sld [smem:[#allocation0]]
  $region53: #{tpu_custom_call.1} parent=0
    _
  %s6 = ssub.s32 1, %s4
  %s7 = scalar_select 0, %s6, %s4
  $region1: #{tpu_custom_call.1} parent=0
    #allocation2 [shape = 'u8[16384]{0}', space=vmem, size = 0x4000, scoped, tag = 'input window, operand 0']
    #allocation3 [shape = 's32[2]{0}', space=sflag, size = 0x8, scoped, tag = 'scoped memory for tpu_custom_call.1']
    #allocation4 [shape = 's32[2]{0}', space=sflag, size = 0x8, scoped, tag = 'scoped memory for tpu_custom_call.1']
    #allocation5 [shape = 'u8[8192]{0}', space=vmem, size = 0x2000, scoped, tag = 'input window, operand 1, single buffered']
    #allocation6 [shape = 's32[1]{0}', space=sflag, size = 0x4, scoped, tag = 'scoped memory for tpu_custom_call.1']
    #allocation7 [shape = 'u8[8192]{0}', space=vmem, size = 0x2000, scoped, tag = 'output window, operand 0']
    %8 = vsyncpa [#allocation3], 0
    %s9 = scalar_lea.sflag [#allocation3], 1
    %10 = vsyncpa %s9, 0
    %11 = vsyncpa [#allocation6], 0
    %12 = vsyncpa [#allocation4], 0
    %s13 = scalar_lea.sflag [#allocation4], 1
    %14 = vsyncpa %s13, 0
    loop: start=0, step=1, limit=4
    $region2: #{tpu_custom_call.1} parent=1 // loop_pre_header
      _
    $region3: #{tpu_custom_call.1} parent=1 // loop_header
      %s16 = sphi 0, %s20
      %p17 = scmp.ge.s32.totalorder %s16, 4
      %s23 = sphi 0, %s35
      %s24 = sphi 0, %s31
      %s25 = sphi 0, %s23
      %s26 = sphi 0, %s24
      %s27 = sphi 0, %s25
      %s28 = sphi 0, %s26
      %s40 = sphi 0, %s42
      %s43 = sphi 0, %s40
      %s44 = sphi 0, %s43
      %s60 = sphi 0, %s44
      %s64 = sphi 0, %s64
      %s66 = sphi 0, %s64
      %s67 = sphi 0, %s66
      %s81 = sphi 0, %s67
      %s85 = sphi 0, %s85
      %s87 = sphi 0, %s85
      %s88 = sphi 0, %s87
      %s102 = sphi 0, %s88
      %s110 = sphi 0, %s112
      %s113 = sphi 0, %s110
      %s114 = sphi 0, %s113
      %s130 = sphi 0, %s114
    $region4: #{tpu_custom_call.1} parent=1 // loop_header_branch
      %19 = sbr.rel (%p17) target = $region8
    $region5: #{tpu_custom_call.1} parent=1 // loop_body
      %s21 = ssub.s32 %s16, 1
      %s22 = ssub.s32 %s16, 2
      %s29 = sadd.s32 1, %s24
      %p30 = scmp.ge.s32.totalorder %s29, 1
      %s31 = scalar_select %p30, 0, %s29
      %s32 = sadd.s32 1, %s23
      %s33 = scalar_select %p30, %s32, %s23
      %p34 = scmp.ge.s32.totalorder %s33, 2
      %s35 = scalar_select %p34, 0, %s33
      %s36 = ssub.s32 %s23, %s35
      %s37 = ssub.s32 %s24, %s31
      %s38 = sor.u32 %s36, %s37
      %p39 = scmp.eq.s32.totalorder %s38, 0
      %s41 = sadd.s32 %s40, 1
      %s42 = scalar_select %p39, %s40, %s41
      %p45 = pneg %p39
      %p46 = scmp.eq.s32.totalorder %s16, 1
      %p47 = por %p45, %p46
      %p48 = scmp.ne.s32.totalorder %s40, %s43
      %p49 = scmp.eq.s32.totalorder %s16, 0
      %p50 = por %p48, %p49
      %p51 = scmp.ne.s32.totalorder %s40, %s43
      %p52 = scmp.eq.s32.totalorder %s21, 1
      %p53 = por %p51, %p52
      %p54 = scmp.ne.s32.totalorder %s43, %s44
      %p55 = scmp.eq.s32.totalorder %s21, 0
      %p56 = por %p54, %p55
      %p57 = scmp.ne.s32.totalorder %s43, %s44
      %p58 = scmp.eq.s32.totalorder %s22, 1
      %p59 = por %p57, %p58
      %p61 = scmp.ne.s32.totalorder %s44, %s60
      %p62 = scmp.eq.s32.totalorder %s22, 0
      %p63 = por %p61, %p62
      %s65 = sadd.s32 %s64, 1
      %p68 = scmp.eq.s32.totalorder %s16, 1
      %p69 = scmp.ne.s32.totalorder %s64, %s66
      %p70 = scmp.eq.s32.totalorder %s16, 0
      %p71 = por %p69, %p70
      %p72 = scmp.ne.s32.totalorder %s64, %s66
      %p73 = scmp.eq.s32.totalorder %s21, 1
      %p74 = por %p72, %p73
      %p75 = scmp.ne.s32.totalorder %s66, %s67
      %p76 = scmp.eq.s32.totalorder %s21, 0
      %p77 = por %p75, %p76
      %p78 = scmp.ne.s32.totalorder %s66, %s67
      %p79 = scmp.eq.s32.totalorder %s22, 1
      %p80 = por %p78, %p79
      %p82 = scmp.ne.s32.totalorder %s67, %s81
      %p83 = scmp.eq.s32.totalorder %s22, 0
      %p84 = por %p82, %p83
      %s86 = sadd.s32 %s85, 1
      %p89 = scmp.eq.s32.totalorder %s16, 1
      %p90 = scmp.ne.s32.totalorder %s85, %s87
      %p91 = scmp.eq.s32.totalorder %s16, 0
      %p92 = por %p90, %p91
      %p93 = scmp.ne.s32.totalorder %s85, %s87
      %p94 = scmp.eq.s32.totalorder %s21, 1
      %p95 = por %p93, %p94
      %p96 = scmp.ne.s32.totalorder %s87, %s88
      %p97 = scmp.eq.s32.totalorder %s21, 0
      %p98 = por %p96, %p97
      %p99 = scmp.ne.s32.totalorder %s87, %s88
      %p100 = scmp.eq.s32.totalorder %s22, 1
      %p101 = por %p99, %p100
      %p103 = scmp.ne.s32.totalorder %s88, %s102
      %p104 = scmp.eq.s32.totalorder %s22, 0
      %p105 = por %p103, %p104
      %s106 = ssub.s32 %s23, %s35
      %s107 = ssub.s32 %s24, %s31
      %s108 = sor.u32 %s106, %s107
      %p109 = scmp.eq.s32.totalorder %s108, 0
      %s111 = sadd.s32 %s110, 1
      %s112 = scalar_select %p109, %s110, %s111
      %p115 = pneg %p109
      %p116 = scmp.eq.s32.totalorder %s16, 1
      %p117 = por %p115, %p116
      %p118 = scmp.ne.s32.totalorder %s110, %s113
      %p119 = scmp.eq.s32.totalorder %s16, 0
      %p120 = por %p118, %p119
      %p121 = scmp.ne.s32.totalorder %s110, %s113
      %p122 = scmp.eq.s32.totalorder %s21, 1
      %p123 = por %p121, %p122
      %p124 = scmp.ne.s32.totalorder %s113, %s114
      %p125 = scmp.eq.s32.totalorder %s21, 0
      %p126 = por %p124, %p125
      %p127 = scmp.ne.s32.totalorder %s113, %s114
      %p128 = scmp.eq.s32.totalorder %s22, 1
      %p129 = por %p127, %p128
      %p131 = scmp.ne.s32.totalorder %s114, %s130
      %p132 = scmp.eq.s32.totalorder %s22, 0
      %p133 = por %p131, %p132
      %p134 = scmp.le.s32.totalorder 1, %s16
      %p135 = scmp.lt.s32.totalorder %s16, 3
      %p136 = pnand %p134, %p135
      %p137 = pneg %p136
      // Predicated region
      $region9: #{tpu_custom_call.1} parent=5 // pred_check
        _
      $region10: #{tpu_custom_call.1} parent=5 // pred_check_branch
        %139 = sbr.rel (%p136) target = $region12
      $region11: #{tpu_custom_call.1} parent=5 // pred_region
        %s140 = ssub.s32 %s16, 1
        // Predicated region
        $region13: #{tpu_custom_call.1} parent=11 // pred_check
          %p141 = pneg %p77
        $region14: #{tpu_custom_call.1} parent=11 // pred_check_branch
          %143 = sbr.rel (%p141) target = $region16
        $region15: #{tpu_custom_call.1} parent=11 // pred_region
          %s145 = ssub.s32 256, 256
          %146 = vsyncadd [#allocation6], %s145
          %s147 = sshll.u32 [#allocation5], 4
          %s148 = int_to_ptr.vmem [resolvable:$true] %s147
          %153 = dma.hbm_to_vmem [thread:$0]  %s1, 256, %s148, [#allocation6], 64, 64, 4
        $region16: #{tpu_custom_call.1} parent=11 // pred_fallthru
          _
        // Predicated region
        $region17: #{tpu_custom_call.1} parent=11 // pred_check
          %p154 = pneg %p98
        $region18: #{tpu_custom_call.1} parent=11 // pred_check_branch
          %156 = sbr.rel (%p154) target = $region20
        $region19: #{tpu_custom_call.1} parent=11 // pred_region
          _
        $region20: #{tpu_custom_call.1} parent=11 // pred_fallthru
          _
      $region12: #{tpu_custom_call.1} parent=5 // pred_fallthru
        _
      %p157 = scmp.lt.s32.totalorder %s16, 2
      // Predicated region
      $region21: #{tpu_custom_call.1} parent=5 // pred_check
        %p158 = pneg %p157
      $region22: #{tpu_custom_call.1} parent=5 // pred_check_branch
        %160 = sbr.rel (%p158) target = $region24
      $region23: #{tpu_custom_call.1} parent=5 // pred_region
        // Predicated region
        $region25: #{tpu_custom_call.1} parent=23 // pred_check
          %p161 = pneg %p50
        $region26: #{tpu_custom_call.1} parent=23 // pred_check_branch
          %163 = sbr.rel (%p161) target = $region28
        $region27: #{tpu_custom_call.1} parent=23 // pred_region
          %s164 = sand.u32 %s40, 1
          %s165 = scalar_lea.sflag [#allocation3], %s164
          %s166 = sand.u32 %s40, 1
          %s167 = smul.addr %s166, 16
          %s168 = scalar_lea.vmem [#allocation2], %s167
          %s169 = smul.u32 2, %s24
          %s171 = ssub.s32 256, 256
          %172 = vsyncadd %s165, %s171
          %s173 = smul.addr %s23, 2
          %s174 = sadd.s32 %s169, %s173
          %s175 = smul.addr %s174, 128
          %s176 = scalar_lea.hbm %s0, %s175
          %s177 = sshll.u32 %s168, 4
          %s178 = int_to_ptr.vmem [resolvable:$true] %s177
          %183 = dma.hbm_to_vmem [thread:$0]  %s176, 256, %s178, %s165, 128, 128, 8
        $region28: #{tpu_custom_call.1} parent=23 // pred_fallthru
          _
      $region24: #{tpu_custom_call.1} parent=5 // pred_fallthru
        _
      %p184 = scmp.le.s32.totalorder 1, %s16
      %p185 = scmp.lt.s32.totalorder %s16, 3
      %p186 = pnand %p184, %p185
      %p187 = pneg %p186
      // Predicated region
      $region29: #{tpu_custom_call.1} parent=5 // pred_check
        _
      $region30: #{tpu_custom_call.1} parent=5 // pred_check_branch
        %189 = sbr.rel (%p186) target = $region32
      $region31: #{tpu_custom_call.1} parent=5 // pred_region
        %s190 = ssub.s32 %s16, 1
        %s191 = sand.u32 %s43, 1
        %s192 = scalar_lea.sflag [#allocation3], %s191
        %s193 = sand.u32 %s43, 1
        %s194 = smul.addr %s193, 16
        %s195 = scalar_lea.vmem [#allocation2], %s194
        // Predicated region
        $region33: #{tpu_custom_call.1} parent=31 // pred_check
          %p196 = pneg %p56
        $region34: #{tpu_custom_call.1} parent=31 // pred_check_branch
          %198 = sbr.rel (%p196) target = $region36
        $region35: #{tpu_custom_call.1} parent=31 // pred_region
          %199 = dma.done %s192, 256
        $region36: #{tpu_custom_call.1} parent=31 // pred_fallthru
          _
        // Predicated region
        $region37: #{tpu_custom_call.1} parent=31 // pred_check
          %p200 = pneg %p77
        $region38: #{tpu_custom_call.1} parent=31 // pred_check_branch
          %202 = sbr.rel (%p200) target = $region40
        $region39: #{tpu_custom_call.1} parent=31 // pred_region
          %203 = dma.done [#allocation6], 256
        $region40: #{tpu_custom_call.1} parent=31 // pred_fallthru
          _
        %s204 = sand.u32 %s43, 1
        %s205 = scalar_lea.sflag [#allocation3], %s204
        %s206 = sand.u32 %s43, 1
        %s207 = smul.addr %s206, 16
        %s208 = scalar_lea.vmem [#allocation2], %s207
        %p209 = pneg %p56
        %p210 = pneg %p53
        %p211 = pneg %p77
        %p212 = pneg %p74
        %p213 = pneg %p98
        %p214 = pneg %p95
        %p215 = pneg %p126
        %p216 = pneg %p123
        %s217 = sand.u32 %s113, 1
        %s218 = scalar_lea.sflag [#allocation4], %s217
        %s219 = sand.u32 %s113, 1
        %s220 = smul.addr %s219, 8
        %s221 = scalar_lea.vmem [#allocation7], %s220
        %s222 = smul.u32 2, %s26
        %s223 = smul.u32 2, %s26
        %v225 = vld [vmem:[%s195] sm:$0xff]
        %v226 = vld [vmem:[%s195 + $0x8] sm:$0xff]
        %v227 = vpack.c.bf16 %v226, %v225
        %v228 = vld [vmem:[#allocation5] sm:$0xf]
        %v229 = vld [vmem:[#allocation5 + $0x4] sm:$0xf]
        %v230 = vld [vmem:[#allocation5 + $0x8] sm:$0xf]
        %v231 = vld [vmem:[#allocation5 + $0xc] sm:$0xf]
        %v232 = vld [vmem:[%s2] sm:$0x1]
        %v234 = vlaneseq
        %v235 = vshrl.u32 %v234, 7
        %v236 = vsub.s32 0, %v235
        %v237 = vrot.slane %v232, %v236
        %v243 = vunpack.c.l.b16 %v228
        %v244 = vunpack.c.l.b16 %v229
        %v245 = vunpack.c.l.b16 %v230
        %v246 = vunpack.c.l.b16 %v231
        %v247 = vpack.c.b16 %v244, %v243
        %v248 = vpack.c.b16 %v246, %v245
        %vm251 = vcmask 261120
        %v253 = vsel %vm251, %v227, 0
        %255 = vmatprep.subr.bf16.mxu0 0
        %256 = vmatpush1.bf16.msra.mxu0 0
        %257 = vmatprep.subr.bf16.mxu0 0
        %258 = vmatpush1.bf16.msra.mxu0 0
        %259 = vmatprep.subr.bf16.mxu0 0
        %260 = vmatpush1.bf16.msra.mxu0 0
        %261 = vmatprep.subr.bf16.mxu0 0
        %262 = vmatpush1.bf16.msra.mxu0 0
        %263 = vmatprep.subr.bf16.mxu0 0
        %264 = vmatpush1.bf16.msra.mxu0 0
        %265 = vmatprep.subr.bf16.mxu0 0
        %266 = vmatpush1.bf16.msra.mxu0 0
        %267 = vmatprep.subr.bf16.mxu0 0
        %268 = vmatpush1.bf16.msra.mxu0 %v248
        %269 = vmatprep.subr.bf16.mxu0 0
        %270 = vmatpush1.bf16.msra.mxu0 %v247
        %271 = vmatprep.subr.bf16.mxu0 0
        %272 = vmatpush2.bf16.msra.mxu0 0
        %273 = vmatprep.subr.bf16.mxu0 0
        %274 = vmatpush2.bf16.msra.mxu0 0
        %275 = vmatprep.subr.bf16.mxu0 0
        %276 = vmatpush2.bf16.msra.mxu0 0
        %277 = vmatprep.subr.bf16.mxu0 0
        %278 = vmatpush2.bf16.msra.mxu0 0
        %279 = vmatprep.subr.bf16.mxu0 0
        %280 = vmatpush2.bf16.msra.mxu0 0
        %281 = vmatprep.subr.bf16.mxu0 0
        %282 = vmatpush2.bf16.msra.mxu0 0
        %283 = vmatprep.subr.bf16.mxu0 0
        %284 = vmatpush2.bf16.msra.mxu0 0
        %285 = vmatprep.subr.bf16.mxu0 0
        %286 = vmatpush2.bf16.msra.mxu0 0
        %287 = vmatprep.mubr.bf16.mxu0 0
        %288 = vmatmul.mubr.bf16.gmra.mxu0 %v253
        %v289 = vpop.f32.mrf.mxu0
        %v290 = vadd.f32 %v237, %v289
        %v291 = vpop.f32.mrf.mxu0
        %v292 = vpop.f32.mrf.mxu0
        %v293 = vadd.f32 %v237, %v292
        %v294 = vpop.f32.mrf.mxu0
        %295 = vdwg.mxu0
        %v296 = vmul.f32 %v290, 0.25
        %v297 = vmul.f32 %v293, 0.25
        %v298 = vpack.c.bf16 %v297, %v296
        %v300 = vunpack.c.l.b16 %v298
        %v301 = vunpack.c.h.b16 %v298
        %v302 = vpack.c.b16 %v300, %v300
        %v303 = vpack.c.b16 %v301, %v301
        %306 = vst [vmem:[%s221] sm:$0xf] %v302
        %307 = vst [vmem:[%s221 + $0x4] sm:$0xf] %v303
        %s308 = sand.u32 %s113, 1
        %s309 = scalar_lea.sflag [#allocation4], %s308
        %s310 = sand.u32 %s113, 1
        %s311 = smul.addr %s310, 8
        %s312 = scalar_lea.vmem [#allocation7], %s311
        // Predicated region
        $region41: #{tpu_custom_call.1} parent=31 // pred_check
          %p313 = pneg %p123
        $region42: #{tpu_custom_call.1} parent=31 // pred_check_branch
          %315 = sbr.rel (%p313) target = $region44
        $region43: #{tpu_custom_call.1} parent=31 // pred_region
          %s316 = smul.u32 2, %s26
          %s318 = ssub.s32 128, 128
          %319 = vsyncadd %s309, %s318
          %s320 = smul.addr %s25, 2
          %s321 = sadd.s32 %s316, %s320
          %s322 = smul.addr %s321, 64
          %s323 = scalar_lea.hbm %s3, %s322
          %s324 = sshll.u32 %s312, 4
          %s325 = int_to_ptr.vmem [resolvable:$true] %s324
          %330 = dma.vmem_to_hbm [thread:$0]  %s325, 128, %s323, %s309, 64, 64, 4
        $region44: #{tpu_custom_call.1} parent=31 // pred_fallthru
          _
      $region32: #{tpu_custom_call.1} parent=5 // pred_fallthru
        _
      %p331 = scmp.le.s32.totalorder 2, %s16
      // Predicated region
      $region45: #{tpu_custom_call.1} parent=5 // pred_check
        %p332 = pneg %p331
      $region46: #{tpu_custom_call.1} parent=5 // pred_check_branch
        %334 = sbr.rel (%p332) target = $region48
      $region47: #{tpu_custom_call.1} parent=5 // pred_region
        %s335 = ssub.s32 %s16, 2
        // Predicated region
        $region49: #{tpu_custom_call.1} parent=47 // pred_check
          %p336 = pneg %p129
        $region50: #{tpu_custom_call.1} parent=47 // pred_check_branch
          %338 = sbr.rel (%p336) target = $region52
        $region51: #{tpu_custom_call.1} parent=47 // pred_region
          %s339 = sand.u32 %s114, 1
          %s340 = scalar_lea.sflag [#allocation4], %s339
          %s341 = sand.u32 %s114, 1
          %s342 = smul.addr %s341, 8
          %s343 = scalar_lea.vmem [#allocation7], %s342
          %344 = dma.done %s340, 128
        $region52: #{tpu_custom_call.1} parent=47 // pred_fallthru
          _
      $region48: #{tpu_custom_call.1} parent=5 // pred_fallthru
        _
    $region6: #{tpu_custom_call.1} parent=1 // loop_footer
      %s20 = sadd.s32 1, %s16
    $region7: #{tpu_custom_call.1} parent=1 // loop_footer_branch
      %15 = sbr.rel target = $region3
    $region8: #{tpu_custom_call.1} parent=1 // loop_exit
      _
    %345 = vsyncpa [#allocation3], 1
    %s346 = scalar_lea.sflag [#allocation3], 1
    %347 = vsyncpa %s346, 1
    %348 = vsyncpa [#allocation6], 1
    %349 = vsyncpa [#allocation4], 1
    %s350 = scalar_lea.sflag [#allocation4], 1
    %351 = vsyncpa %s350, 1

</llo_original>
